<compile_context>
chip_gen: v7x
topology: tpu7x:2x2x1
jax: 0.10.0
libtpu: 0.0.40
codegen_flags: <defaults>
</compile_context>

<pallas_src>
import jax
import jax.numpy as jnp
from jax import lax
from jax.experimental import pallas as pl
from jax.experimental.pallas import tpu as pltpu


def _se_kernel(x_ref, w1_ref, w2_ref, o_ref):
    # x_ref/o_ref: (TB, C, HW) block; w1_ref/w2_ref: (Cr, C) resident weights.
    x = x_ref[...]                                           # input dtype

    # Squeeze: global average pool over the lane (spatial) axis.
    # f32 accumulator only for the (TB, C) result — no full-tile f32 copy.
    y = jnp.sum(x, axis=-1, dtype=jnp.float32) * (1.0 / x.shape[-1])   # (TB, C)

    # Excitation: fc1 -> relu -> fc2 -> sigmoid (tiny, f32 on the MXU).
    h = lax.dot_general(y, w1_ref[...],
                        dimension_numbers=(((1,), (1,)), ((), ())),
                        preferred_element_type=jnp.float32)  # (TB, Cr)
    h = jnp.maximum(h, 0.0)
    s = jnp.dot(h, w2_ref[...], preferred_element_type=jnp.float32)    # (TB, C)
    s = jax.nn.sigmoid(s)

    # Scale: broadcast the per-channel gate over the lane axis; multiply in
    # the input dtype (no f32 copy of x).
    o_ref[...] = x * s.astype(o_ref.dtype)[:, :, None]


def _chip_info():
    """(num_tensorcores, vmem_capacity_bytes, target_block_bytes) — best effort."""
    num_tc, vmem_cap, target = 1, 64 << 20, 4 << 20          # conservative default
    kind = ""
    try:
        kind = jax.devices()[0].device_kind.lower()
    except Exception:
        pass
    if "v5 lite" in kind or "v5e" in kind or "v5lite" in kind:
        num_tc, vmem_cap, target = 1, 128 << 20, 3 << 20
    elif "v6" in kind:
        num_tc, vmem_cap, target = 1, 128 << 20, 6 << 20
    elif "7" in kind:                                         # "TPU7x" / "TPU v7x"
        num_tc, vmem_cap, target = 2, 64 << 20, 8 << 20
    elif "v4" in kind or "v5p" in kind or "v5" in kind:       # megacore chips
        num_tc, vmem_cap, target = 2, 128 << 20, 4 << 20
    try:  # refine VMEM capacity if the query is available
        vmem_cap = int(pltpu.get_tpu_info().vmem_capacity_bytes)
    except Exception:
        pass
    return num_tc, vmem_cap, target


def _pick_tb(B, per_elem_bytes, *, num_tc, target_bytes, x_vmem_budget):
    """Batch-tile size for (tb, C, HW) blocks; per_elem_bytes = bytes of one (C, HW) slice."""
    # Hard cap: double-buffered input + output blocks (4x block) must fit the budget.
    hard_cap = max(1, x_vmem_budget // (4 * per_elem_bytes))
    # Soft cap: block big enough to amortize the ~0.35us fixed per-grid-step overhead.
    soft_cap = max(1, target_bytes // per_elem_bytes)
    tb = max(1, min(B, hard_cap, soft_cap))

    steps = -(-B // tb)
    # Multi-TensorCore chips: prefer an even number (>= 2) of grid steps so the
    # "parallel" axis shards evenly — but never shrink blocks below ~1 MiB.
    if num_tc >= 2 and B >= 2 and (steps < 2 or steps % 2 == 1):
        min_block = 1 << 20
        for cand in range(tb, 0, -1):
            s = -(-B // cand)
            if s >= 2 and s % 2 == 0 and cand * per_elem_bytes >= min_block:
                tb, steps = cand, s
                break
    # Rebalance a ragged last block if it keeps the same number of steps.
    tb_bal = -(-B // steps)
    if -(-B // tb_bal) == steps:
        tb = tb_bal
    return tb


def se_layer(x_nchw, w1, w2, *, donate_x=False):
    """x_nchw: (B, C, H, W); w1: (Cr, C) [fc1, out x in]; w2: (Cr, C) [fc2, in x out]."""
    B, C, H, W = x_nchw.shape
    HW = H * W
    x = x_nchw.reshape(B, C, HW)

    num_tc, vmem_cap, target = _chip_info()
    per_elem = C * HW * x.dtype.itemsize
    w_bytes = w1.size * w1.dtype.itemsize + w2.size * w2.dtype.itemsize

    # Budget for the pipelined x blocks: ~60% of VMEM, minus (double-buffered) weights.
    x_budget = max((1 << 20), int(0.6 * vmem_cap) - 4 * w_bytes)
    # Feasibility guard (v7x 64 MiB): if even one batch element cannot be
    # double-buffered, serialize the x DMAs instead of failing to compile.
    single_buffer = 4 * per_elem > x_budget
    # TODO(synk): if 2 * per_elem still exceeds the budget a two-pass variant
    # (pool+gate pass, then an HW-tiled rescale pass) is required.

    tb = 1 if single_buffer else _pick_tb(
        B, per_elem, num_tc=num_tc, target_bytes=target, x_vmem_budget=x_budget)
    steps = pl.cdiv(B, tb)

    # Explicit scoped-VMEM limit sized to the actual footprint (+ headroom).
    nbuf = 2 if single_buffer else 4
    footprint = nbuf * tb * per_elem + 4 * w_bytes + (2 << 20)
    vmem_limit = int(min(max(footprint, 32 << 20), int(0.95 * vmem_cap)))

    x_spec_kwargs = {}
    if single_buffer:
        x_spec_kwargs = dict(pipeline_mode=pl.Buffered(1))

    call_kwargs = {}
    if donate_x:
        call_kwargs["input_output_aliases"] = {0: 0}

    out = pl.pallas_call(
        _se_kernel,
        out_shape=jax.ShapeDtypeStruct((B, C, HW), x_nchw.dtype),
        grid_spec=pltpu.PrefetchScalarGridSpec(
            num_scalar_prefetch=0,
            grid=(steps,),
            in_specs=[
                pl.BlockSpec((tb, C, HW), lambda b: (b, 0, 0), **x_spec_kwargs),
                pl.BlockSpec(w1.shape, lambda b: (0, 0)),
                pl.BlockSpec(w2.shape, lambda b: (0, 0)),
            ],
            out_specs=pl.BlockSpec((tb, C, HW), lambda b: (b, 0, 0), **x_spec_kwargs),
        ),
        compiler_params=pltpu.CompilerParams(
            dimension_semantics=("parallel",),
            vmem_limit_bytes=vmem_limit),
        **call_kwargs,
    )(x, w1, w2)

    return out.reshape(B, C, H, W)


def se_layer_reference(x_nchw, w1, w2):
    """Pure-JAX reference mirroring the PyTorch forward (bias-free Linears)."""
    y = jnp.mean(x_nchw, axis=(2, 3))                 # (B, C)  avg_pool -> view
    h = jnp.maximum(y @ w1.T, 0.0)                    # Linear(C -> Cr) + ReLU
    s = jax.nn.sigmoid(h @ w2)                        # Linear(Cr -> C) + Sigmoid
    return x_nchw * s[:, :, None, None]               # x * y.expand_as(x)


if __name__ == "__main__":
    # Small shapes consistent with the module: channel=32, reduction=16 -> hidden=2.
    # H = W = 16 so HW = 256 (lane-dense, multiple of 128).
    B, C, H, W = 4, 32, 16, 16
    reduction = 16
    Cr = C // reduction

    key = jax.random.PRNGKey(0)
    kx, k1, k2 = jax.random.split(key, 3)
    x = jax.random.normal(kx, (B, C, H, W), dtype=jnp.float32)
    # w1: fc1 weight in PyTorch (out, in) = (Cr, C) layout (used directly).
    # w2: fc2 weight already transposed to (in, out) = (Cr, C) layout.
    w1 = jax.random.normal(k1, (Cr, C), dtype=jnp.float32) * (1.0 / jnp.sqrt(C))
    w2 = jax.random.normal(k2, (Cr, C), dtype=jnp.float32) * (1.0 / jnp.sqrt(Cr))

    out = se_layer(x, w1, w2)
    jax.block_until_ready(out)

    ref = se_layer_reference(x, w1, w2)
    assert out.shape == (B, C, H, W)
    assert jnp.allclose(out, ref, atol=1e-5, rtol=1e-5)

    print("KERNEL_OK")
</pallas_src>

<mosaic_0001>
module attributes {stable_mosaic.version = 11 : i64} {
  func.func @_se_kernel(%arg0: i32, %arg1: memref<4x32x256xf32, #tpu.memory_space<vmem>>, %arg2: memref<2x32xf32, #tpu.memory_space<vmem>>, %arg3: memref<2x32xf32, #tpu.memory_space<vmem>>, %arg4: memref<4x32x256xf32, #tpu.memory_space<vmem>>) attributes {dimension_semantics = [#tpu.dimension_semantics<parallel>], iteration_bounds = array<i64: 1>, scalar_prefetch = 0 : i64, scratch_operands = 0 : i64, tpu.core_type = #tpu.core_type<tc>, window_params = [{transform_indices = @transform_0, window_bounds = array<i64: 4, 32, 256>}, {pipeline_mode = #tpu.pipeline_mode<synchronous>, transform_indices = @transform_1, window_bounds = array<i64: 2, 32>}, {pipeline_mode = #tpu.pipeline_mode<synchronous>, transform_indices = @transform_2, window_bounds = array<i64: 2, 32>}, {transform_indices = @transform_3, window_bounds = array<i64: 4, 32, 256>}]} {
    %c0 = arith.constant 0 : index
    %c0_0 = arith.constant 0 : index
    %c0_1 = arith.constant 0 : index
    %0 = vector.load %arg1[%c0, %c0_0, %c0_1] : memref<4x32x256xf32, #tpu.memory_space<vmem>>, vector<4x32x256xf32>
    %cst = arith.constant dense<0.000000e+00> : vector<4x32xf32>
    %1 = vector.multi_reduction <add>, %0, %cst [2] : vector<4x32x256xf32> to vector<4x32xf32>
    %cst_2 = arith.constant 3.906250e-03 : f32
    %2 = vector.broadcast %cst_2 : f32 to vector<4x32xf32>
    %3 = arith.mulf %1, %2 : vector<4x32xf32>
    %c0_3 = arith.constant 0 : index
    %c0_4 = arith.constant 0 : index
    %4 = vector.load %arg2[%c0_3, %c0_4] : memref<2x32xf32, #tpu.memory_space<vmem>>, vector<2x32xf32>
    %cst_5 = arith.constant dense<0.000000e+00> : vector<4x2xf32>
    %5 = tpu.matmul %3, %4, %cst_5 {dimension_numbers = #tpu.dot_dimension_numbers<[1], [1], [0], [0], [0, 0, 1, 0], [], []>} : vector<4x32xf32>, vector<2x32xf32>, vector<4x2xf32> -> vector<4x2xf32>
    %cst_6 = arith.constant 0.000000e+00 : f32
    %6 = vector.broadcast %cst_6 : f32 to vector<4x2xf32>
    %7 = arith.maximumf %5, %6 : vector<4x2xf32>
    %c0_7 = arith.constant 0 : index
    %c0_8 = arith.constant 0 : index
    %8 = vector.load %arg3[%c0_7, %c0_8] : memref<2x32xf32, #tpu.memory_space<vmem>>, vector<2x32xf32>
    %cst_9 = arith.constant dense<0.000000e+00> : vector<4x32xf32>
    %9 = tpu.matmul %7, %8, %cst_9 {dimension_numbers = #tpu.dot_dimension_numbers<[1], [0], [0], [1], [0, 0, 1, 1], [], []>} : vector<4x2xf32>, vector<2x32xf32>, vector<4x32xf32> -> vector<4x32xf32>
    %10 = arith.negf %9 : vector<4x32xf32>
    %11 = math.exp %10 : vector<4x32xf32>
    %cst_10 = arith.constant 1.000000e+00 : f32
    %12 = vector.broadcast %cst_10 : f32 to vector<4x32xf32>
    %13 = arith.addf %12, %11 : vector<4x32xf32>
    %14 = arith.divf %12, %13 : vector<4x32xf32>
    %15 = vector.shape_cast %14 : vector<4x32xf32> to vector<4x32x1xf32>
    %16 = vector.broadcast %15 : vector<4x32x1xf32> to vector<4x32x256xf32>
    %17 = arith.mulf %0, %16 : vector<4x32x256xf32>
    %c0_11 = arith.constant 0 : index
    %c0_12 = arith.constant 0 : index
    %c0_13 = arith.constant 0 : index
    %18 = vector.load %arg4[%c0_11, %c0_12, %c0_13] : memref<4x32x256xf32, #tpu.memory_space<vmem>>, vector<4x32x256xf32>
    tpu.vector_store %arg4[%c0_11, %c0_12, %c0_13], %17 {strides = array<i32>} : memref<4x32x256xf32, #tpu.memory_space<vmem>>, vector<4x32x256xf32>,
    return
  }
  func.func @transform_0(%arg0: i32) -> (i32, i32, i32) {
    %c0_i32 = arith.constant 0 : i32
    %c0_i32_0 = arith.constant 0 : i32
    %c0_i32_1 = arith.constant 0 : i32
    return %arg0, %c0_i32, %c0_i32_0 : i32, i32, i32
  }
  func.func @transform_1(%arg0: i32) -> (i32, i32) {
    %c0_i32 = arith.constant 0 : i32
    %c0_i32_0 = arith.constant 0 : i32
    %c0_i32_1 = arith.constant 0 : i32
    return %c0_i32, %c0_i32_0 : i32, i32
  }
  func.func @transform_2(%arg0: i32) -> (i32, i32) {
    %c0_i32 = arith.constant 0 : i32
    %c0_i32_0 = arith.constant 0 : i32
    %c0_i32_1 = arith.constant 0 : i32
    return %c0_i32, %c0_i32_0 : i32, i32
  }
  func.func @transform_3(%arg0: i32) -> (i32, i32, i32) {
    %c0_i32 = arith.constant 0 : i32
    %c0_i32_0 = arith.constant 0 : i32
    %c0_i32_1 = arith.constant 0 : i32
    return %arg0, %c0_i32, %c0_i32_0 : i32, i32, i32
  }
}

</mosaic_0001>

<llo_original>
// kernel: tpu_custom_call.1
$region0: #{tpu_custom_call.1}
  #allocation0 [shape = 'u32[]', space=smem, size = 0x4, offset = 0x4, fixed_abs, tag = 'smem constant byte address 0x4 - core index']
  #allocation1 [shape = 'u32[144,128]{1,0:T(1,128)}', space=vmem, size = 0x12000, scoped, tag = 'internal scratch']
  %s0 = inlined_call_operand.hbm [shape: f32[4,32,256], index: 0, kind: input, shape index: {}]
  %s1 = inlined_call_operand.vmem [shape: f32[2,32], index: 1, kind: input, shape index: {}]
  %s2 = inlined_call_operand.vmem [shape: f32[2,32], index: 2, kind: input, shape index: {}]
  %s3 = inlined_call_operand.hbm [shape: f32[4,32,256], index: 3, kind: output, shape index: {}]
  %s4 = sld [smem:[#allocation0]]
  $region26: #{tpu_custom_call.1} parent=0
    _
  %s6 = ssub.s32 1, %s4
  %s7 = scalar_select 0, %s6, %s4
  $region1: #{tpu_custom_call.1} parent=0
    #allocation2 [shape = 'u8[131072]{0}', space=vmem, size = 0x20000, scoped, tag = 'input window, operand 0, single buffered']
    #allocation3 [shape = 's32[1]{0}', space=sflag, size = 0x4, scoped, tag = 'scoped memory for tpu_custom_call.1']
    #allocation4 [shape = 's32[1]{0}', space=sflag, size = 0x4, scoped, tag = 'scoped memory for tpu_custom_call.1']
    #allocation5 [shape = 'u8[131072]{0}', space=vmem, size = 0x20000, scoped, tag = 'output window, operand 0, single buffered']
    %8 = vsyncpa [#allocation3], 0
    %9 = vsyncpa [#allocation4], 0
    // Predicated region
    $region2: #{tpu_custom_call.1} parent=1 // pred_check
      _
    $region3: #{tpu_custom_call.1} parent=1 // pred_check_branch
      %11 = sbr.rel (0) target = $region5
    $region4: #{tpu_custom_call.1} parent=1 // pred_region
      %s13 = ssub.s32 4096, 4096
      %14 = vsyncadd [#allocation3], %s13
      %s15 = sshll.u32 [#allocation2], 4
      %s16 = int_to_ptr.vmem [resolvable:$true] %s15
      %21 = dma.hbm_to_vmem [thread:$0]  %s0, 4096, %s16, [#allocation3], 256, 256, 16
    $region5: #{tpu_custom_call.1} parent=1 // pred_fallthru
      _
    // Predicated region
    $region6: #{tpu_custom_call.1} parent=1 // pred_check
      _
    $region7: #{tpu_custom_call.1} parent=1 // pred_check_branch
      %23 = sbr.rel (0) target = $region9
    $region8: #{tpu_custom_call.1} parent=1 // pred_region
      _
    $region9: #{tpu_custom_call.1} parent=1 // pred_fallthru
      _
    // Predicated region
    $region10: #{tpu_custom_call.1} parent=1 // pred_check
      _
    $region11: #{tpu_custom_call.1} parent=1 // pred_check_branch
      %25 = sbr.rel (0) target = $region13
    $region12: #{tpu_custom_call.1} parent=1 // pred_region
      _
    $region13: #{tpu_custom_call.1} parent=1 // pred_fallthru
      _
    // Predicated region
    $region14: #{tpu_custom_call.1} parent=1 // pred_check
      _
    $region15: #{tpu_custom_call.1} parent=1 // pred_check_branch
      %27 = sbr.rel (0) target = $region17
    $region16: #{tpu_custom_call.1} parent=1 // pred_region
      %28 = dma.done [#allocation3], 4096
    $region17: #{tpu_custom_call.1} parent=1 // pred_fallthru
      _
    %v29 = vld [vmem:[#allocation2] sm:$0xff]
    %v30 = vld [vmem:[#allocation2 + $0x8] sm:$0xff]
    %v31 = vld [vmem:[#allocation2 + $0x10] sm:$0xff]
    %v32 = vld [vmem:[#allocation2 + $0x18] sm:$0xff]
    %v33 = vld [vmem:[#allocation2 + $0x20] sm:$0xff]
    %v34 = vld [vmem:[#allocation2 + $0x28] sm:$0xff]
    %v35 = vld [vmem:[#allocation2 + $0x30] sm:$0xff]
    %v36 = vld [vmem:[#allocation2 + $0x38] sm:$0xff]
    %v37 = vld [vmem:[#allocation2 + $0x40] sm:$0xff]
    %v38 = vld [vmem:[#allocation2 + $0x48] sm:$0xff]
    %v39 = vld [vmem:[#allocation2 + $0x50] sm:$0xff]
    %v40 = vld [vmem:[#allocation2 + $0x58] sm:$0xff]
    %v41 = vld [vmem:[#allocation2 + $0x60] sm:$0xff]
    %v42 = vld [vmem:[#allocation2 + $0x68] sm:$0xff]
    %v43 = vld [vmem:[#allocation2 + $0x70] sm:$0xff]
    %v44 = vld [vmem:[#allocation2 + $0x78] sm:$0xff]
    %v45 = vld [vmem:[#allocation2 + $0x80] sm:$0xff]
    %v46 = vld [vmem:[#allocation2 + $0x88] sm:$0xff]
    %v47 = vld [vmem:[#allocation2 + $0x90] sm:$0xff]
    %v48 = vld [vmem:[#allocation2 + $0x98] sm:$0xff]
    %v49 = vld [vmem:[#allocation2 + $0xa0] sm:$0xff]
    %v50 = vld [vmem:[#allocation2 + $0xa8] sm:$0xff]
    %v51 = vld [vmem:[#allocation2 + $0xb0] sm:$0xff]
    %v52 = vld [vmem:[#allocation2 + $0xb8] sm:$0xff]
    %v53 = vld [vmem:[#allocation2 + $0xc0] sm:$0xff]
    %v54 = vld [vmem:[#allocation2 + $0xc8] sm:$0xff]
    %v55 = vld [vmem:[#allocation2 + $0xd0] sm:$0xff]
    %v56 = vld [vmem:[#allocation2 + $0xd8] sm:$0xff]
    %v57 = vld [vmem:[#allocation2 + $0xe0] sm:$0xff]
    %v58 = vld [vmem:[#allocation2 + $0xe8] sm:$0xff]
    %v59 = vld [vmem:[#allocation2 + $0xf0] sm:$0xff]
    %v60 = vld [vmem:[#allocation2 + $0xf8] sm:$0xff]
    %v61 = vadd.f32 %v29, %v30
    %62 = vadd.xlane.f32.xlu0 %v61
    %v63 = vpop.xlane.xlu0 %62
    %v64 = vadd.f32 %v31, %v32
    %65 = vadd.xlane.f32.xlu0 %v64
    %v66 = vpop.xlane.xlu0 %65
    %v67 = vadd.f32 %v33, %v34
    %68 = vadd.xlane.f32.xlu0 %v67
    %v69 = vpop.xlane.xlu0 %68
    %v70 = vadd.f32 %v35, %v36
    %71 = vadd.xlane.f32.xlu0 %v70
    %v72 = vpop.xlane.xlu0 %71
    %v73 = vadd.f32 %v37, %v38
    %74 = vadd.xlane.f32.xlu0 %v73
    %v75 = vpop.xlane.xlu0 %74
    %v76 = vadd.f32 %v39, %v40
    %77 = vadd.xlane.f32.xlu0 %v76
    %v78 = vpop.xlane.xlu0 %77
    %v79 = vadd.f32 %v41, %v42
    %80 = vadd.xlane.f32.xlu0 %v79
    %v81 = vpop.xlane.xlu0 %80
    %v82 = vadd.f32 %v43, %v44
    %83 = vadd.xlane.f32.xlu0 %v82
    %v84 = vpop.xlane.xlu0 %83
    %v85 = vadd.f32 %v45, %v46
    %86 = vadd.xlane.f32.xlu0 %v85
    %v87 = vpop.xlane.xlu0 %86
    %v88 = vadd.f32 %v47, %v48
    %89 = vadd.xlane.f32.xlu0 %v88
    %v90 = vpop.xlane.xlu0 %89
    %v91 = vadd.f32 %v49, %v50
    %92 = vadd.xlane.f32.xlu0 %v91
    %v93 = vpop.xlane.xlu0 %92
    %v94 = vadd.f32 %v51, %v52
    %95 = vadd.xlane.f32.xlu0 %v94
    %v96 = vpop.xlane.xlu0 %95
    %v97 = vadd.f32 %v53, %v54
    %98 = vadd.xlane.f32.xlu0 %v97
    %v99 = vpop.xlane.xlu0 %98
    %v100 = vadd.f32 %v55, %v56
    %101 = vadd.xlane.f32.xlu0 %v100
    %v102 = vpop.xlane.xlu0 %101
    %v103 = vadd.f32 %v57, %v58
    %104 = vadd.xlane.f32.xlu0 %v103
    %v105 = vpop.xlane.xlu0 %104
    %v106 = vadd.f32 %v59, %v60
    %107 = vadd.xlane.f32.xlu0 %v106
    %v108 = vpop.xlane.xlu0 %107
    %v109 = vmul.f32 %v63, 0.00390625
    %v110 = vmul.f32 %v66, 0.00390625
    %v111 = vmul.f32 %v69, 0.00390625
    %v112 = vmul.f32 %v72, 0.00390625
    %v113 = vmul.f32 %v75, 0.00390625
    %v114 = vmul.f32 %v78, 0.00390625
    %v115 = vmul.f32 %v81, 0.00390625
    %v116 = vmul.f32 %v84, 0.00390625
    %v117 = vmul.f32 %v87, 0.00390625
    %v118 = vmul.f32 %v90, 0.00390625
    %v119 = vmul.f32 %v93, 0.00390625
    %v120 = vmul.f32 %v96, 0.00390625
    %v121 = vmul.f32 %v99, 0.00390625
    %v122 = vmul.f32 %v102, 0.00390625
    %v123 = vmul.f32 %v105, 0.00390625
    %v124 = vmul.f32 %v108, 0.00390625
    %v125 = vld [vmem:[%s1] sm:$0x3]
    %v142 = vlaneseq
    %v143 = vand.u32 %v142, 127
    %v144 = vlaneseq
    %v145 = vshrl.u32 %v144, 7
    %v146 = vsub.s32 %v143, %v145
    %v147 = vrot.slane %v109, %v146
    %v148 = vadd.s32 %v143, 4294967288
    %v149 = vlaneseq
    %v150 = vshrl.u32 %v149, 7
    %v151 = vsub.s32 %v148, %v150
    %v152 = vrot.slane %v110, %v151
    %vm153 = vcmask 130112
    %v154 = vsel %vm153, %v152, %v147
    %v155 = vadd.s32 %v143, 4294967280
    %v156 = vlaneseq
    %v157 = vshrl.u32 %v156, 7
    %v158 = vsub.s32 %v155, %v157
    %v159 = vrot.slane %v111, %v158
    %vm160 = vcmask 195712
    %v161 = vsel %vm160, %v159, %v154
    %v162 = vadd.s32 %v143, 4294967272
    %v163 = vlaneseq
    %v164 = vshrl.u32 %v163, 7
    %v165 = vsub.s32 %v162, %v164
    %v166 = vrot.slane %v112, %v165
    %vm167 = vcmask 261312
    %v168 = vsel %vm167, %v166, %v161
    %v169 = vlaneseq
    %v170 = vshrl.u32 %v169, 7
    %v171 = vsub.s32 %v143, %v170
    %v172 = vrot.slane %v113, %v171
    %v173 = vlaneseq
    %v174 = vshrl.u32 %v173, 7
    %v175 = vsub.s32 %v148, %v174
    %v176 = vrot.slane %v114, %v175
    %v177 = vsel %vm153, %v176, %v172
    %v178 = vlaneseq
    %v179 = vshrl.u32 %v178, 7
    %v180 = vsub.s32 %v155, %v179
    %v181 = vrot.slane %v115, %v180
    %v182 = vsel %vm160, %v181, %v177
    %v183 = vlaneseq
    %v184 = vshrl.u32 %v183, 7
    %v185 = vsub.s32 %v162, %v184
    %v186 = vrot.slane %v116, %v185
    %v187 = vsel %vm167, %v186, %v182
    %v188 = vlaneseq
    %v189 = vshrl.u32 %v188, 7
    %v190 = vsub.s32 %v143, %v189
    %v191 = vrot.slane %v117, %v190
    %v192 = vlaneseq
    %v193 = vshrl.u32 %v192, 7
    %v194 = vsub.s32 %v148, %v193
    %v195 = vrot.slane %v118, %v194
    %v196 = vsel %vm153, %v195, %v191
    %v197 = vlaneseq
    %v198 = vshrl.u32 %v197, 7
    %v199 = vsub.s32 %v155, %v198
    %v200 = vrot.slane %v119, %v199
    %v201 = vsel %vm160, %v200, %v196
    %v202 = vlaneseq
    %v203 = vshrl.u32 %v202, 7
    %v204 = vsub.s32 %v162, %v203
    %v205 = vrot.slane %v120, %v204
    %v206 = vsel %vm167, %v205, %v201
    %v207 = vlaneseq
    %v208 = vshrl.u32 %v207, 7
    %v209 = vsub.s32 %v143, %v208
    %v210 = vrot.slane %v121, %v209
    %v211 = vlaneseq
    %v212 = vshrl.u32 %v211, 7
    %v213 = vsub.s32 %v148, %v212
    %v214 = vrot.slane %v122, %v213
    %v215 = vsel %vm153, %v214, %v210
    %v216 = vlaneseq
    %v217 = vshrl.u32 %v216, 7
    %v218 = vsub.s32 %v155, %v217
    %v219 = vrot.slane %v123, %v218
    %v220 = vsel %vm160, %v219, %v215
    %v221 = vlaneseq
    %v222 = vshrl.u32 %v221, 7
    %v223 = vsub.s32 %v162, %v222
    %v224 = vrot.slane %v124, %v223
    %v225 = vsel %vm167, %v224, %v220
    %vm226 = vcmask 1041409
    %v227 = vsel %vm226, %v187, %v168
    %vm228 = vcmask 1042434
    %v229 = vsel %vm228, %v206, %v227
    %vm230 = vcmask 1043459
    %v231 = vsel %vm230, %v225, %v229
    %vm232 = vcmask 261120
    %v233 = vsel %vm232, %v231, 0
    %v236 = vsel %vm232, %v125, 0
    %238 = vmatprep.subr.mxu0 0.0
    %239 = vmatpush1.xpose.msra.mxu0 %v236
    %240 = vmatprep.subr.mxu0 0.0
    %241 = vmatpush1.xpose.msra.mxu0 0.0
    %242 = vmatprep.subr.mxu0 0.0
    %243 = vmatpush1.xpose.msra.mxu0 0.0
    %244 = vmatprep.subr.mxu0 0.0
    %245 = vmatpush1.xpose.msra.mxu0 0.0
    %246 = vmatprep.subr.mxu0 0.0
    %247 = vmatpush1.xpose.msra.mxu0 0.0
    %248 = vmatprep.subr.mxu0 0.0
    %249 = vmatpush1.xpose.msra.mxu0 0.0
    %250 = vmatprep.subr.mxu0 0.0
    %251 = vmatpush1.xpose.msra.mxu0 0.0
    %252 = vmatprep.subr.mxu0 0.0
    %253 = vmatpush1.xpose.msra.mxu0 0.0
    %254 = vmatprep.subr.mxu0 0.0
    %255 = vmatpush1.xpose.msra.mxu0 0.0
    %256 = vmatprep.subr.mxu0 0.0
    %257 = vmatpush1.xpose.msra.mxu0 0.0
    %258 = vmatprep.subr.mxu0 0.0
    %259 = vmatpush1.xpose.msra.mxu0 0.0
    %260 = vmatprep.subr.mxu0 0.0
    %261 = vmatpush1.xpose.msra.mxu0 0.0
    %262 = vmatprep.subr.mxu0 0.0
    %263 = vmatpush1.xpose.msra.mxu0 0.0
    %264 = vmatprep.subr.mxu0 0.0
    %265 = vmatpush1.xpose.msra.mxu0 0.0
    %266 = vmatprep.subr.mxu0 0.0
    %267 = vmatpush1.xpose.msra.mxu0 0.0
    %268 = vmatprep.subr.mxu0 0.0
    %269 = vmatpush1.xpose.msra.mxu0 0.0
    %270 = vmatprep.subr.mxu0 0.0
    %271 = vmatpush1.xpose.msra.mxu0 0.0
    %272 = vmatprep.subr.mxu0 0.0
    %273 = vmatpush1.xpose.msra.mxu0 0.0
    %274 = vmatprep.subr.mxu0 0.0
    %275 = vmatpush1.xpose.msra.mxu0 0.0
    %276 = vmatprep.subr.mxu0 0.0
    %277 = vmatpush1.xpose.msra.mxu0 0.0
    %278 = vmatprep.subr.mxu0 0.0
    %279 = vmatpush1.xpose.msra.mxu0 0.0
    %280 = vmatprep.subr.mxu0 0.0
    %281 = vmatpush1.xpose.msra.mxu0 0.0
    %282 = vmatprep.subr.mxu0 0.0
    %283 = vmatpush1.xpose.msra.mxu0 0.0
    %284 = vmatprep.subr.mxu0 0.0
    %285 = vmatpush1.xpose.msra.mxu0 0.0
    %286 = vmatprep.subr.mxu0 0.0
    %287 = vmatpush1.xpose.msra.mxu0 0.0
    %288 = vmatprep.subr.mxu0 0.0
    %289 = vmatpush1.xpose.msra.mxu0 0.0
    %290 = vmatprep.subr.mxu0 0.0
    %291 = vmatpush1.xpose.msra.mxu0 0.0
    %292 = vmatprep.subr.mxu0 0.0
    %293 = vmatpush1.xpose.msra.mxu0 0.0
    %294 = vmatprep.subr.mxu0 0.0
    %295 = vmatpush1.xpose.msra.mxu0 0.0
    %296 = vmatprep.subr.mxu0 0.0
    %297 = vmatpush1.xpose.msra.mxu0 0.0
    %298 = vmatprep.subr.mxu0 0.0
    %299 = vmatpush1.xpose.msra.mxu0 0.0
    %300 = vmatprep.subr.mxu0 0.0
    %301 = vmatpush1.xpose.msra.mxu0 0.0
    %302 = vmatprep.mubr.f32.mxu0 0.0
    %303 = vmatmul.mubr.f32.gmra.mrb[0].mxu0 %v233
    %v304 = vpop.f32.mrb[0].mxu0
    %v305 = vadd.f32 0.0, %v304
    %v306 = vpop.f32.mrb[0].mxu0
    %307 = vdwg.mxu0
    %v308 = vmax.f32 %v305, 0.0
    %v309 = vld [vmem:[%s2] sm:$0x3]
    %vm310 = vcmask 15360
    %v312 = vsel %vm310, %v308, 0
    %vm314 = vcmask 1041408
    %v316 = vsel %vm314, %v309, 0
    %318 = vmatprep.subr.mxu0 0.0
    %319 = vmatpush1.msra.mxu0 %v316
    %320 = vmatprep.subr.mxu0 0.0
    %321 = vmatpush1.msra.mxu0 0.0
    %322 = vmatprep.subr.mxu0 0.0
    %323 = vmatpush1.msra.mxu0 0.0
    %324 = vmatprep.subr.mxu0 0.0
    %325 = vmatpush1.msra.mxu0 0.0
    %326 = vmatprep.subr.mxu0 0.0
    %327 = vmatpush1.msra.mxu0 0.0
    %328 = vmatprep.subr.mxu0 0.0
    %329 = vmatpush1.msra.mxu0 0.0
    %330 = vmatprep.subr.mxu0 0.0
    %331 = vmatpush1.msra.mxu0 0.0
    %332 = vmatprep.subr.mxu0 0.0
    %333 = vmatpush1.msra.mxu0 0.0
    %334 = vmatprep.subr.mxu0 0.0
    %335 = vmatpush1.msra.mxu0 0.0
    %336 = vmatprep.subr.mxu0 0.0
    %337 = vmatpush1.msra.mxu0 0.0
    %338 = vmatprep.subr.mxu0 0.0
    %339 = vmatpush1.msra.mxu0 0.0
    %340 = vmatprep.subr.mxu0 0.0
    %341 = vmatpush1.msra.mxu0 0.0
    %342 = vmatprep.subr.mxu0 0.0
    %343 = vmatpush1.msra.mxu0 0.0
    %344 = vmatprep.subr.mxu0 0.0
    %345 = vmatpush1.msra.mxu0 0.0
    %346 = vmatprep.subr.mxu0 0.0
    %347 = vmatpush1.msra.mxu0 0.0
    %348 = vmatprep.subr.mxu0 0.0
    %349 = vmatpush1.msra.mxu0 0.0
    %350 = vmatprep.subr.mxu0 0.0
    %351 = vmatpush1.msra.mxu0 0.0
    %352 = vmatprep.subr.mxu0 0.0
    %353 = vmatpush1.msra.mxu0 0.0
    %354 = vmatprep.subr.mxu0 0.0
    %355 = vmatpush1.msra.mxu0 0.0
    %356 = vmatprep.subr.mxu0 0.0
    %357 = vmatpush1.msra.mxu0 0.0
    %358 = vmatprep.subr.mxu0 0.0
    %359 = vmatpush1.msra.mxu0 0.0
    %360 = vmatprep.subr.mxu0 0.0
    %361 = vmatpush1.msra.mxu0 0.0
    %362 = vmatprep.subr.mxu0 0.0
    %363 = vmatpush1.msra.mxu0 0.0
    %364 = vmatprep.subr.mxu0 0.0
    %365 = vmatpush1.msra.mxu0 0.0
    %366 = vmatprep.subr.mxu0 0.0
    %367 = vmatpush1.msra.mxu0 0.0
    %368 = vmatprep.subr.mxu0 0.0
    %369 = vmatpush1.msra.mxu0 0.0
    %370 = vmatprep.subr.mxu0 0.0
    %371 = vmatpush1.msra.mxu0 0.0
    %372 = vmatprep.subr.mxu0 0.0
    %373 = vmatpush1.msra.mxu0 0.0
    %374 = vmatprep.subr.mxu0 0.0
    %375 = vmatpush1.msra.mxu0 0.0
    %376 = vmatprep.subr.mxu0 0.0
    %377 = vmatpush1.msra.mxu0 0.0
    %378 = vmatprep.subr.mxu0 0.0
    %379 = vmatpush1.msra.mxu0 0.0
    %380 = vmatprep.subr.mxu0 0.0
    %381 = vmatpush1.msra.mxu0 0.0
    %382 = vmatprep.mubr.f32.mxu0 0.0
    %383 = vmatmul.mubr.f32.gmra.mrb[0].mxu0 %v312
    %v384 = vpop.f32.mrb[0].mxu0
    %v385 = vadd.f32 0.0, %v384
    %v386 = vpop.f32.mrb[0].mxu0
    %387 = vdwg.mxu0
    %v388 = vxor.u32 %v385, 2147483648
    %v389 = vmul.f32 %v388, 1.442695
    %v390 = vpow.pop %v389
    %v391 = vadd.f32 %v390, 1.0
    %v392 = vrcp.pop %v391
    %v393 = vmul.f32 1.0, %v392
    %v394 = vlaneseq
    %v395 = vshrl.u32 %v394, 7
    %v396 = vsub.s32 0, %v395
    %v397 = vrot.slane %v393, %v396
    %399 = vbcast.lane.b32.xlu0 %v397, 256
    %v400 = vpop.permute.xlu0 %399
    %s402 = sor.u32 256, 8
    %403 = vbcast.lane.b32.xlu0 %v397, %s402
    %v404 = vpop.permute.xlu0 %403
    %s406 = sor.u32 256, 16
    %407 = vbcast.lane.b32.xlu0 %v397, %s406
    %v408 = vpop.permute.xlu0 %407
    %s410 = sor.u32 256, 24
    %411 = vbcast.lane.b32.xlu0 %v397, %s410
    %v412 = vpop.permute.xlu0 %411
    %v413 = vlaneseq
    %v414 = vshrl.u32 %v413, 7
    %v415 = vsub.s32 1, %v414
    %v416 = vrot.slane %v393, %v415
    %418 = vbcast.lane.b32.xlu0 %v416, 256
    %v419 = vpop.permute.xlu0 %418
    %s421 = sor.u32 256, 8
    %422 = vbcast.lane.b32.xlu0 %v416, %s421
    %v423 = vpop.permute.xlu0 %422
    %s425 = sor.u32 256, 16
    %426 = vbcast.lane.b32.xlu0 %v416, %s425
    %v427 = vpop.permute.xlu0 %426
    %s429 = sor.u32 256, 24
    %430 = vbcast.lane.b32.xlu0 %v416, %s429
    %v431 = vpop.permute.xlu0 %430
    %v432 = vlaneseq
    %v433 = vshrl.u32 %v432, 7
    %v434 = vsub.s32 2, %v433
    %v435 = vrot.slane %v393, %v434
    %437 = vbcast.lane.b32.xlu0 %v435, 256
    %v438 = vpop.permute.xlu0 %437
    %s440 = sor.u32 256, 8
    %441 = vbcast.lane.b32.xlu0 %v435, %s440
    %v442 = vpop.permute.xlu0 %441
    %s444 = sor.u32 256, 16
    %445 = vbcast.lane.b32.xlu0 %v435, %s444
    %v446 = vpop.permute.xlu0 %445
    %s448 = sor.u32 256, 24
    %449 = vbcast.lane.b32.xlu0 %v435, %s448
    %v450 = vpop.permute.xlu0 %449
    %v451 = vlaneseq
    %v452 = vshrl.u32 %v451, 7
    %v453 = vsub.s32 3, %v452
    %v454 = vrot.slane %v393, %v453
    %456 = vbcast.lane.b32.xlu0 %v454, 256
    %v457 = vpop.permute.xlu0 %456
    %s459 = sor.u32 256, 8
    %460 = vbcast.lane.b32.xlu0 %v454, %s459
    %v461 = vpop.permute.xlu0 %460
    %s463 = sor.u32 256, 16
    %464 = vbcast.lane.b32.xlu0 %v454, %s463
    %v465 = vpop.permute.xlu0 %464
    %s467 = sor.u32 256, 24
    %468 = vbcast.lane.b32.xlu0 %v454, %s467
    %v469 = vpop.permute.xlu0 %468
    %v470 = vmul.f32 %v29, %v400
    %v471 = vmul.f32 %v30, %v400
    %v472 = vmul.f32 %v31, %v404
    %v473 = vmul.f32 %v32, %v404
    %v474 = vmul.f32 %v33, %v408
    %v475 = vmul.f32 %v34, %v408
    %v476 = vmul.f32 %v35, %v412
    %v477 = vmul.f32 %v36, %v412
    %v478 = vmul.f32 %v37, %v419
    %v479 = vmul.f32 %v38, %v419
    %v480 = vmul.f32 %v39, %v423
    %v481 = vmul.f32 %v40, %v423
    %v482 = vmul.f32 %v41, %v427
    %v483 = vmul.f32 %v42, %v427
    %v484 = vmul.f32 %v43, %v431
    %v485 = vmul.f32 %v44, %v431
    %v486 = vmul.f32 %v45, %v438
    %v487 = vmul.f32 %v46, %v438
    %v488 = vmul.f32 %v47, %v442
    %v489 = vmul.f32 %v48, %v442
    %v490 = vmul.f32 %v49, %v446
    %v491 = vmul.f32 %v50, %v446
    %v492 = vmul.f32 %v51, %v450
    %v493 = vmul.f32 %v52, %v450
    %v494 = vmul.f32 %v53, %v457
    %v495 = vmul.f32 %v54, %v457
    %v496 = vmul.f32 %v55, %v461
    %v497 = vmul.f32 %v56, %v461
    %v498 = vmul.f32 %v57, %v465
    %v499 = vmul.f32 %v58, %v465
    %v500 = vmul.f32 %v59, %v469
    %v501 = vmul.f32 %v60, %v469
    %502 = vst [vmem:[#allocation5] sm:$0xff] %v470
    %503 = vst [vmem:[#allocation5 + $0x8] sm:$0xff] %v471
    %504 = vst [vmem:[#allocation5 + $0x10] sm:$0xff] %v472
    %505 = vst [vmem:[#allocation5 + $0x18] sm:$0xff] %v473
    %506 = vst [vmem:[#allocation5 + $0x20] sm:$0xff] %v474
    %507 = vst [vmem:[#allocation5 + $0x28] sm:$0xff] %v475
    %508 = vst [vmem:[#allocation5 + $0x30] sm:$0xff] %v476
    %509 = vst [vmem:[#allocation5 + $0x38] sm:$0xff] %v477
    %510 = vst [vmem:[#allocation5 + $0x40] sm:$0xff] %v478
    %511 = vst [vmem:[#allocation5 + $0x48] sm:$0xff] %v479
    %512 = vst [vmem:[#allocation5 + $0x50] sm:$0xff] %v480
    %513 = vst [vmem:[#allocation5 + $0x58] sm:$0xff] %v481
    %514 = vst [vmem:[#allocation5 + $0x60] sm:$0xff] %v482
    %515 = vst [vmem:[#allocation5 + $0x68] sm:$0xff] %v483
    %516 = vst [vmem:[#allocation5 + $0x70] sm:$0xff] %v484
    %517 = vst [vmem:[#allocation5 + $0x78] sm:$0xff] %v485
    %518 = vst [vmem:[#allocation5 + $0x80] sm:$0xff] %v486
    %519 = vst [vmem:[#allocation5 + $0x88] sm:$0xff] %v487
    %520 = vst [vmem:[#allocation5 + $0x90] sm:$0xff] %v488
    %521 = vst [vmem:[#allocation5 + $0x98] sm:$0xff] %v489
    %522 = vst [vmem:[#allocation5 + $0xa0] sm:$0xff] %v490
    %523 = vst [vmem:[#allocation5 + $0xa8] sm:$0xff] %v491
    %524 = vst [vmem:[#allocation5 + $0xb0] sm:$0xff] %v492
    %525 = vst [vmem:[#allocation5 + $0xb8] sm:$0xff] %v493
    %526 = vst [vmem:[#allocation5 + $0xc0] sm:$0xff] %v494
    %527 = vst [vmem:[#allocation5 + $0xc8] sm:$0xff] %v495
    %528 = vst [vmem:[#allocation5 + $0xd0] sm:$0xff] %v496
    %529 = vst [vmem:[#allocation5 + $0xd8] sm:$0xff] %v497
    %530 = vst [vmem:[#allocation5 + $0xe0] sm:$0xff] %v498
    %531 = vst [vmem:[#allocation5 + $0xe8] sm:$0xff] %v499
    %532 = vst [vmem:[#allocation5 + $0xf0] sm:$0xff] %v500
    %533 = vst [vmem:[#allocation5 + $0xf8] sm:$0xff] %v501
    // Predicated region
    $region18: #{tpu_custom_call.1} parent=1 // pred_check
      _
    $region19: #{tpu_custom_call.1} parent=1 // pred_check_branch
      %535 = sbr.rel (0) target = $region21
    $region20: #{tpu_custom_call.1} parent=1 // pred_region
      %s537 = ssub.s32 4096, 4096
      %538 = vsyncadd [#allocation4], %s537
      %s539 = sshll.u32 [#allocation5], 4
      %s540 = int_to_ptr.vmem [resolvable:$true] %s539
      %545 = dma.vmem_to_hbm [thread:$0]  %s540, 4096, %s3, [#allocation4], 256, 256, 16
    $region21: #{tpu_custom_call.1} parent=1 // pred_fallthru
      _
    // Predicated region
    $region22: #{tpu_custom_call.1} parent=1 // pred_check
      _
    $region23: #{tpu_custom_call.1} parent=1 // pred_check_branch
      %547 = sbr.rel (0) target = $region25
    $region24: #{tpu_custom_call.1} parent=1 // pred_region
      %548 = dma.done [#allocation4], 4096
    $region25: #{tpu_custom_call.1} parent=1 // pred_fallthru
      _
    %549 = vsyncpa [#allocation3], 1
    %550 = vsyncpa [#allocation4], 1

</llo_original>
